<compile_context>
chip_gen: v7x
topology: tpu7x:2x2x1
jax: 0.10.0
libtpu: 0.0.40
codegen_flags: <defaults>
</compile_context>

<pallas_src>
import jax
import jax.numpy as jnp
from jax import lax
from jax.experimental import pallas as pl
from jax.experimental.pallas import tpu as pltpu


def _pick_row_tile(b):
    """Largest MXU-friendly tile that divides B (falls back to the full batch)."""
    for t in (512, 256, 128):
        if b % t == 0:
            return t
    return b


# ---------------------------------------------------------------------------
# Pre-pass: row-wise L2 normalization (+ cast to the matmul dtype)
# ---------------------------------------------------------------------------
def _normalize_kernel(x_ref, out_ref):
    x = x_ref[...].astype(jnp.float32)
    # rsqrt * mul instead of sqrt + divide: rides the EUP slot.
    # NOTE: like the PyTorch reference, no epsilon -> an all-zero row gives NaN.
    inv_norm = lax.rsqrt(jnp.sum(x * x, axis=-1, keepdims=True))
    out_ref[...] = (x * inv_norm).astype(out_ref.dtype)


def _row_normalize(x, tile, out_dtype):
    b, d = x.shape
    return pl.pallas_call(
        _normalize_kernel,
        out_shape=jax.ShapeDtypeStruct((b, d), out_dtype),
        grid_spec=pltpu.PrefetchScalarGridSpec(
            num_scalar_prefetch=0,
            grid=(b // tile,),
            in_specs=[pl.BlockSpec((tile, d), lambda i: (i, 0))],
            out_specs=pl.BlockSpec((tile, d), lambda i: (i, 0)),
        ),
        compiler_params=pltpu.CompilerParams(
            dimension_semantics=("parallel",),
        ),
    )(x)


# ---------------------------------------------------------------------------
# Main kernel: tiled weighted-BCE over the BxB score matrix
# ---------------------------------------------------------------------------
def _make_loss_kernel(w_pos, w_neg):
    """w_pos = 1/(2B), w_neg = neg_weight/(2B): final reduction folded in."""
    w_pos = float(w_pos)
    w_neg = float(w_neg)

    def kernel(params_ref, n1_ref, n2_ref, loss_ref):
        i = pl.program_id(0)
        j = pl.program_id(1)

        @pl.when((i == 0) & (j == 0))
        def _init():
            loss_ref[...] = jnp.zeros_like(loss_ref)

        # (T, D) . (T, D)^T -> (T, T) on the MXU, f32 accumulation.
        dots = lax.dot_general(
            n1_ref[...], n2_ref[...],
            (((1,), (1,)), ((), ())),
            preferred_element_type=jnp.float32)

        scale = params_ref[0]
        bias = params_ref[1]
        x = scale * dots + bias

        # Numerically stable softplus(x) = max(x,0) + log1p(exp(-|x|))
        #   = BCE-with-logits for label 0.
        sp = jnp.maximum(x, 0.0) + jnp.log1p(jnp.exp(-jnp.abs(x)))

        # Count every element as a negative (pre-scaled weight).
        loss_ref[...] += w_neg * jnp.sum(sp, axis=(0, 1), keepdims=True)

        # Only diagonal tiles pay the mask cost: fix up the true-diagonal
        # elements to positive-label, weight-1 contributions.
        @pl.when(i == j)
        def _diag_fixup():
            t = sp.shape[0]
            row = lax.broadcasted_iota(jnp.int32, (t, t), 0)
            col = lax.broadcasted_iota(jnp.int32, (t, t), 1)
            corr = jnp.where(row == col,
                             (w_pos - w_neg) * sp - w_pos * x,
                             jnp.float32(0.0))
            loss_ref[...] += jnp.sum(corr, axis=(0, 1), keepdims=True)

    return kernel


def twhin_loss_with_parameters(node1, node2, scale, bias, reg_weight=0.0,
                               *, matmul_dtype=jnp.bfloat16):
    """Returns (bce_loss, reg_weight * l2_reg), matching the PyTorch module."""
    assert node1.ndim == 2 and node1.shape == node2.shape
    b, d = node1.shape
    assert b > 1, "need batch_size > 1 (neg_weight divides by B*B - B)"

    tile = _pick_row_tile(b)
    num_tiles = b // tile

    # Hoisted normalization pre-pass (also the bf16 cast feeding the MXU).
    n1 = _row_normalize(node1, tile, matmul_dtype)
    n2 = _row_normalize(node2, tile, matmul_dtype)

    # Fold '/ 2 / batch_size' into the per-element weights (compile-time floats).
    w_pos = 1.0 / (2.0 * b)
    w_neg = (float(b) / float(b * b - b)) / (2.0 * b)

    params = jnp.stack([jnp.asarray(scale, jnp.float32),
                        jnp.asarray(bias, jnp.float32)])

    itemsize = jnp.dtype(matmul_dtype).itemsize
    cost = pl.CostEstimate(
        flops=2 * b * b * d + 8 * b * b,
        transcendentals=2 * b * b,                       # exp + log1p per element
        bytes_accessed=(1 + num_tiles) * b * d * itemsize + 4,
    )

    loss = pl.pallas_call(
        _make_loss_kernel(w_pos, w_neg),
        out_shape=jax.ShapeDtypeStruct((1, 1), jnp.float32),
        grid_spec=pltpu.PrefetchScalarGridSpec(
            num_scalar_prefetch=0,
            # j (n2 tiles) innermost: the n1 row tile stays resident across it.
            grid=(num_tiles, num_tiles),
            in_specs=[
                pl.BlockSpec(memory_space=pltpu.MemorySpace.SMEM),  # [scale, bias]
                pl.BlockSpec((tile, d), lambda i, j: (i, 0)),        # n1 row tile
                pl.BlockSpec((tile, d), lambda i, j: (j, 0)),        # n2 row tile
            ],
            # Same (0,0) block for every grid step -> resident scalar accumulator.
            out_specs=pl.BlockSpec((1, 1), lambda i, j: (0, 0)),
        ),
        compiler_params=pltpu.CompilerParams(
            dimension_semantics=("arbitrary", "arbitrary"),
            vmem_limit_bytes=32 * 1024 * 1024,
        ),
        cost_estimate=cost,
    )(params, n1, n2)

    # mean(n1_norm**2) + mean(n2_norm**2) over row-normalized embeddings is
    # identically 2/D (each normalized row has unit squared sum).
    # TODO(synk): if regularization of the *raw* embeddings is intended, compute
    # mean(node1**2) + mean(node2**2) here instead (trivial XLA reduction).
    l2_reg = jnp.float32(2.0 / d)

    return loss[0, 0], jnp.float32(reg_weight) * l2_reg


# ---------------------------------------------------------------------------
# Plain-JAX transcription of the PyTorch forward (verification only)
# ---------------------------------------------------------------------------
def _reference(node1, node2, scale, bias, reg_weight):
    n1 = node1 / jnp.sqrt(jnp.sum(node1 ** 2, axis=-1))[:, None]
    n2 = node2 / jnp.sqrt(jnp.sum(node2 ** 2, axis=-1))[:, None]
    B = node1.shape[0]
    neg_w = float(B) / float(B * B - B)
    dots = n1 @ n2.T
    diag = jnp.diag(dots)
    offdiag = dots.flatten()[1:].reshape(B - 1, B + 1)[:, :-1].flatten()
    logits = jnp.concatenate([diag, offdiag])
    labels = jnp.zeros_like(logits).at[:B].set(1.0)
    weights = jnp.full_like(logits, neg_w).at[:B].set(1.0)
    l2 = jnp.mean(n1 * n1) + jnp.mean(n2 * n2)
    x = scale * logits + bias
    bce = jnp.maximum(x, 0.0) - x * labels + jnp.log1p(jnp.exp(-jnp.abs(x)))
    loss = jnp.sum(weights * bce) / 2.0 / B
    return loss, reg_weight * l2


if __name__ == "__main__":
    key = jax.random.PRNGKey(0)
    k1, k2 = jax.random.split(key)
    B, D = 8, 32
    node1 = jax.random.normal(k1, (B, D), dtype=jnp.float32)
    node2 = jax.random.normal(k2, (B, D), dtype=jnp.float32)

    # nn.Parameter(tensor(1.0)) / nn.Parameter(tensor(0.0))
    scale = jnp.float32(1.0)
    bias = jnp.float32(0.0)
    reg_weight = 0.1  # module default is 0; nonzero to exercise the path

    ref_loss, ref_reg = _reference(node1, node2, scale, bias, reg_weight)

    # Exact (f32 MXU) path: tight tolerance.
    loss32, reg32 = twhin_loss_with_parameters(
        node1, node2, scale, bias, reg_weight, matmul_dtype=jnp.float32)
    loss32, reg32 = jax.block_until_ready((loss32, reg32))
    assert jnp.allclose(loss32, ref_loss, rtol=1e-5, atol=1e-5), (loss32, ref_loss)
    assert jnp.allclose(reg32, ref_reg, rtol=1e-5, atol=1e-5), (reg32, ref_reg)

    # Default fast path (bf16 inputs to the MXU, f32 accumulate): looser check.
    loss16, reg16 = twhin_loss_with_parameters(node1, node2, scale, bias, reg_weight)
    loss16, reg16 = jax.block_until_ready((loss16, reg16))
    assert jnp.allclose(loss16, ref_loss, rtol=5e-3, atol=5e-3), (loss16, ref_loss)
    assert jnp.allclose(reg16, ref_reg, rtol=1e-5, atol=1e-5), (reg16, ref_reg)

    print("KERNEL_OK")
</pallas_src>

<mosaic_0001>
module attributes {stable_mosaic.version = 11 : i64} {
  func.func @_normalize_kernel(%arg0: i32, %arg1: memref<8x32xf32, #tpu.memory_space<vmem>>, %arg2: memref<8x32xf32, #tpu.memory_space<vmem>>) attributes {dimension_semantics = [#tpu.dimension_semantics<parallel>], iteration_bounds = array<i64: 1>, scalar_prefetch = 0 : i64, scratch_operands = 0 : i64, tpu.core_type = #tpu.core_type<tc>, window_params = [{transform_indices = @transform_0, window_bounds = array<i64: 8, 32>}, {transform_indices = @transform_1, window_bounds = array<i64: 8, 32>}]} {
    %c0 = arith.constant 0 : index
    %c0_0 = arith.constant 0 : index
    %0 = vector.load %arg1[%c0, %c0_0] : memref<8x32xf32, #tpu.memory_space<vmem>>, vector<8x32xf32>
    %1 = arith.mulf %0, %0 : vector<8x32xf32>
    %cst = arith.constant dense<0.000000e+00> : vector<8xf32>
    %2 = vector.multi_reduction <add>, %1, %cst [1] : vector<8x32xf32> to vector<8xf32>
    %3 = vector.shape_cast %2 : vector<8xf32> to vector<8x1xf32>
    %4 = math.rsqrt %3 : vector<8x1xf32>
    %5 = vector.broadcast %4 : vector<8x1xf32> to vector<8x32xf32>
    %6 = arith.mulf %0, %5 : vector<8x32xf32>
    %c0_1 = arith.constant 0 : index
    %c0_2 = arith.constant 0 : index
    %7 = vector.load %arg2[%c0_1, %c0_2] : memref<8x32xf32, #tpu.memory_space<vmem>>, vector<8x32xf32>
    tpu.vector_store %arg2[%c0_1, %c0_2], %6 {strides = array<i32>} : memref<8x32xf32, #tpu.memory_space<vmem>>, vector<8x32xf32>,
    return
  }
  func.func @transform_0(%arg0: i32) -> (i32, i32) {
    %c0_i32 = arith.constant 0 : i32
    %c0_i32_0 = arith.constant 0 : i32
    return %arg0, %c0_i32 : i32, i32
  }
  func.func @transform_1(%arg0: i32) -> (i32, i32) {
    %c0_i32 = arith.constant 0 : i32
    %c0_i32_0 = arith.constant 0 : i32
    return %arg0, %c0_i32 : i32, i32
  }
}

</mosaic_0001>

<llo_original>
// kernel: tpu_custom_call.1
$region0: #{tpu_custom_call.1}
  #allocation0 [shape = 'u32[]', space=smem, size = 0x4, offset = 0x4, fixed_abs, tag = 'smem constant byte address 0x4 - core index']
  #allocation1 [shape = 'u32[144,128]{1,0:T(1,128)}', space=vmem, size = 0x12000, scoped, tag = 'internal scratch']
  %s0 = inlined_call_operand.hbm [shape: f32[8,32], index: 0, kind: input, shape index: {}]
  %s1 = inlined_call_operand.hbm [shape: f32[8,32], index: 1, kind: output, shape index: {}]
  %s2 = sld [smem:[#allocation0]]
  $region18: #{tpu_custom_call.1} parent=0
    _
  %s4 = ssub.s32 1, %s2
  %s5 = scalar_select 0, %s4, %s2
  $region1: #{tpu_custom_call.1} parent=0
    #allocation2 [shape = 'u8[4096]{0}', space=vmem, size = 0x1000, scoped, tag = 'input window, operand 0, single buffered']
    #allocation3 [shape = 's32[1]{0}', space=sflag, size = 0x4, scoped, tag = 'scoped memory for tpu_custom_call.1']
    #allocation4 [shape = 's32[1]{0}', space=sflag, size = 0x4, scoped, tag = 'scoped memory for tpu_custom_call.1']
    #allocation5 [shape = 'u8[4096]{0}', space=vmem, size = 0x1000, scoped, tag = 'output window, operand 0, single buffered']
    %6 = vsyncpa [#allocation3], 0
    %7 = vsyncpa [#allocation4], 0
    // Predicated region
    $region2: #{tpu_custom_call.1} parent=1 // pred_check
      _
    $region3: #{tpu_custom_call.1} parent=1 // pred_check_branch
      %9 = sbr.rel (0) target = $region5
    $region4: #{tpu_custom_call.1} parent=1 // pred_region
      %s11 = ssub.s32 128, 128
      %12 = vsyncadd [#allocation3], %s11
      %s14 = sshll.u32 [#allocation2], 4
      %s15 = int_to_ptr.vmem [resolvable:$true] %s14
      %17 = dma.hbm_to_vmem [thread:$0]  %s0, 128, %s15, [#allocation3]
    $region5: #{tpu_custom_call.1} parent=1 // pred_fallthru
      _
    // Predicated region
    $region6: #{tpu_custom_call.1} parent=1 // pred_check
      _
    $region7: #{tpu_custom_call.1} parent=1 // pred_check_branch
      %19 = sbr.rel (0) target = $region9
    $region8: #{tpu_custom_call.1} parent=1 // pred_region
      %20 = dma.done [#allocation3], 128
    $region9: #{tpu_custom_call.1} parent=1 // pred_fallthru
      _
    %v21 = vld [vmem:[#allocation2] sm:$0xff]
    %v22 = vmul.f32 %v21, %v21
    %vm23 = vcmask 261120
    %v24 = vsel %vm23, %v22, 0.0
    %25 = vadd.xlane.f32.xlu0 %v24
    %v26 = vpop.xlane.xlu0 %25
    %v27 = vrsqrt.pop %v26
    %v28 = vmul.f32 %v21, %v27
    %29 = vst.msk [vmem:[#allocation5] sm:$0xff] %vm23, %v28
    // Predicated region
    $region10: #{tpu_custom_call.1} parent=1 // pred_check
      _
    $region11: #{tpu_custom_call.1} parent=1 // pred_check_branch
      %31 = sbr.rel (0) target = $region13
    $region12: #{tpu_custom_call.1} parent=1 // pred_region
      %s33 = ssub.s32 128, 128
      %34 = vsyncadd [#allocation4], %s33
      %s36 = sshll.u32 [#allocation5], 4
      %s37 = int_to_ptr.vmem [resolvable:$true] %s36
      %39 = dma.vmem_to_hbm [thread:$0]  %s37, 128, %s1, [#allocation4]
    $region13: #{tpu_custom_call.1} parent=1 // pred_fallthru
      _
    // Predicated region
    $region14: #{tpu_custom_call.1} parent=1 // pred_check
      _
    $region15: #{tpu_custom_call.1} parent=1 // pred_check_branch
      %41 = sbr.rel (0) target = $region17
    $region16: #{tpu_custom_call.1} parent=1 // pred_region
      %42 = dma.done [#allocation4], 128
    $region17: #{tpu_custom_call.1} parent=1 // pred_fallthru
      _
    %43 = vsyncpa [#allocation3], 1
    %44 = vsyncpa [#allocation4], 1

</llo_original>
